<compile_context>
chip_gen: v7x
topology: tpu7x:2x2x1
jax: 0.10.0
libtpu: 0.0.40
codegen_flags: <defaults>
</compile_context>

<pallas_src>
import functools
import math

import jax
import jax.numpy as jnp
from jax import lax
from jax.experimental import pallas as pl
from jax.experimental.pallas import tpu as pltpu

_NEG_INF = -1e30  # large finite negative: avoids inf - inf = NaN in the online softmax


# ----------------------------------------------------------------------------- helpers
def _round_up(n, m):
    return ((n + m - 1) // m) * m


def _tile_bytes(rows, cols, itemsize):
    """Bytes of one VMEM tile padded to the (8, 128) vreg grid."""
    return _round_up(rows, 8) * _round_up(cols, 128) * itemsize


def _vmem_limit_bytes(working_set_bytes):
    """Request ~2x the estimated working set, capped at ~85% of physical VMEM."""
    try:
        cap = int(pltpu.get_tpu_info().vmem_capacity_bytes)
    except Exception:  # info query unavailable -> assume the smallest generation (v7x)
        cap = 64 * 1024 * 1024
    return int(min(int(cap * 0.85), max(2 * working_set_bytes, 32 * 1024 * 1024)))


def _single_buffered_spec(block_shape, index_map):
    """BlockSpec for grid-constant operands (weights / bias): single VMEM buffer."""
    try:
        return pl.BlockSpec(block_shape, index_map, pipeline_mode=pl.Buffered(1))
    except Exception:  # older jax without pipeline_mode: fall back to default buffering
        return pl.BlockSpec(block_shape, index_map)


# ----------------------------------------------------------------------------- kernels
def _qkv_proj_kernel(x_ref, wq_ref, wk_ref, wv_ref, q_ref, k_ref, v_ref, *, tr, NH, DH):
    """(tr, D) x tile -> head-major (NH, tr, DH) Q (pre-scaled), K, V tiles."""
    x = x_ref[...]
    for w_ref, o_ref in ((wq_ref, q_ref), (wk_ref, k_ref), (wv_ref, v_ref)):
        y = jnp.dot(x, w_ref[...], preferred_element_type=jnp.float32)
        y = pltpu.einshape("tnd->ntd", y.reshape(tr, NH, DH))
        o_ref[...] = y.astype(o_ref.dtype)


def _attn_kernel(qi_tab_ref, ki_tab_ref, q_ref, k_ref, v_ref, wo_ref, bo_ref, o_ref,
                 m_scr, l_scr, acc_scr, *, tq, tk, NH, DH):
    step = pl.program_id(1)
    qi = qi_tab_ref[step]
    ki = ki_tab_ref[step]

    # first kv tile of this q tile: reset online-softmax state
    @pl.when(ki == 0)
    def _():
        m_scr[...] = jnp.full_like(m_scr, _NEG_INF)
        l_scr[...] = jnp.zeros_like(l_scr)
        acc_scr[...] = jnp.zeros_like(acc_scr)

    vt = v_ref[...]                                                  # (NH, tk, DH)
    # scores for all heads in one batched MXU call (Q is pre-scaled by 1/sqrt(DH))
    scores = jnp.einsum("nqd,nkd->nqk", q_ref[...], k_ref[...],
                        preferred_element_type=jnp.float32)         # (NH, tq, tk) f32

    def online_softmax_update(s):
        m_prev = m_scr[...]
        m_new = jnp.maximum(m_prev, jnp.max(s, axis=-1, keepdims=True))
        alpha = jnp.exp(m_prev - m_new)
        p = jnp.exp(s - m_new)
        l_scr[...] = alpha * l_scr[...] + jnp.sum(p, axis=-1, keepdims=True)
        acc_scr[...] = alpha * acc_scr[...] + jnp.einsum(
            "nqk,nkd->nqd", p.astype(vt.dtype), vt,
            preferred_element_type=jnp.float32)
        m_scr[...] = m_new

    # strictly-below-diagonal tile: fully unmasked -> no iota / select work
    @pl.when(ki != qi)
    def _():
        online_softmax_update(scores)

    # diagonal tile: mask the upper triangle; it is also the last kv tile of this
    # q tile, so normalize, merge heads and apply the fused output projection.
    @pl.when(ki == qi)
    def _():
        row = lax.broadcasted_iota(jnp.int32, (tq, tk), 0)
        col = lax.broadcasted_iota(jnp.int32, (tq, tk), 1)
        online_softmax_update(jnp.where((row >= col)[None, :, :], scores, _NEG_INF))

        y = acc_scr[...] * pl.reciprocal(l_scr[...], approx=True)   # (NH, tq, DH) f32
        y = pltpu.einshape("ntd->tnd", y).reshape(tq, NH * DH)      # (tq, D)
        out = jnp.dot(y.astype(wo_ref.dtype), wo_ref[...],
                      preferred_element_type=jnp.float32) + bo_ref[...]
        o_ref[...] = out.astype(o_ref.dtype)


# ----------------------------------------------------------------------------- wrapper
def causal_self_attention(x, w_qkv, w_out, b_out, num_heads, *,
                          block_q=256, block_k=256, mxu_dtype=None):
    """Fused causal self-attention forward (eval mode).

    x: (B, T, D); w_qkv: (D, 3D) [no bias]; w_out: (D, D); b_out: (D,).
    mxu_dtype: dtype of MXU operands (default bf16, f32 accumulation); pass jnp.float32
               for bit-tighter agreement with an f32 reference.
    block_q/block_k: square tile size; 256 suits the v6e/v7x MXU, use 128 on v5e.
    """
    B, T, D = x.shape
    NH = num_heads
    assert D % NH == 0, "num_heads must divide embed_dim"
    DH = D // NH
    assert w_qkv.shape == (D, 3 * D) and w_out.shape == (D, D) and b_out.shape == (D,)

    mxu_dtype = jnp.dtype(jnp.bfloat16 if mxu_dtype is None else mxu_dtype)
    out_dtype = x.dtype

    tq = min(block_q, T)
    tk = min(block_k, T)
    assert tq == tk, "the triangular tile schedule assumes square (tq == tk) tiles"
    assert T % tq == 0, "T must be divisible by the tile size"
    assert tq % 8 == 0 or tq == T
    nq = T // tq

    # Split the fused QKV weight outside the kernels; fold the 1/sqrt(DH) query scale
    # into W_q so the hot loop never multiplies by it.
    scale = 1.0 / math.sqrt(DH)
    w_q = (w_qkv[:, 0 * D:1 * D] * scale).astype(mxu_dtype)
    w_k = w_qkv[:, 1 * D:2 * D].astype(mxu_dtype)
    w_v = w_qkv[:, 2 * D:3 * D].astype(mxu_dtype)
    w_o = w_out.astype(mxu_dtype)
    b_o = b_out.reshape(1, D).astype(jnp.float32)
    x_c = x.astype(mxu_dtype)
    isz = mxu_dtype.itemsize
    osz = jnp.dtype(out_dtype).itemsize

    # ---- pass 1: QKV projection -> head-major Q, K, V in HBM (O(tile) VMEM).
    # TODO(synk): for very large D the (D, D) weights should additionally be K-tiled.
    proj_ws = (2 * _tile_bytes(tq, D, isz)                     # x tile (double-buffered)
               + 3 * _tile_bytes(D, D, isz)                    # W_q/W_k/W_v (single)
               + 3 * 2 * NH * _tile_bytes(tq, DH, isz))        # q/k/v out tiles
    q_hm, k_hm, v_hm = pl.pallas_call(
        functools.partial(_qkv_proj_kernel, tr=tq, NH=NH, DH=DH),
        out_shape=[jax.ShapeDtypeStruct((B, NH, T, DH), mxu_dtype)] * 3,
        grid=(B, nq),
        in_specs=[
            pl.BlockSpec((pl.Squeezed(), tq, D), lambda b, r: (b, r, 0)),
            _single_buffered_spec((D, D), lambda b, r: (0, 0)),
            _single_buffered_spec((D, D), lambda b, r: (0, 0)),
            _single_buffered_spec((D, D), lambda b, r: (0, 0)),
        ],
        out_specs=[pl.BlockSpec((pl.Squeezed(), NH, tq, DH),
                                lambda b, r: (b, 0, r, 0))] * 3,
        compiler_params=pltpu.CompilerParams(
            dimension_semantics=("parallel", "parallel"),
            vmem_limit_bytes=_vmem_limit_bytes(proj_ws)),
    )(x_c, w_q, w_k, w_v)

    # ---- pass 2: flash attention over the lower-triangular tile schedule, fused with
    # the output projection.  Scalar-prefetched (qi, ki) tables linearize the triangle
    # so above-diagonal steps never run; the diagonal tile of each q row comes last,
    # which is where the output is normalized, head-merged, projected and written.
    pairs = [(qi, ki) for qi in range(nq) for ki in range(qi + 1)]
    qi_tab = jnp.asarray([p[0] for p in pairs], dtype=jnp.int32)
    ki_tab = jnp.asarray([p[1] for p in pairs], dtype=jnp.int32)
    n_steps = len(pairs)

    attn_ws = (2 * NH * _tile_bytes(tq, DH, isz)               # Q tile (double-buffered)
               + 2 * 2 * NH * _tile_bytes(tk, DH, isz)         # K, V tiles
               + 2 * _tile_bytes(tq, D, osz)                   # output tile
               + _tile_bytes(D, D, isz)                        # W_out (single-buffered)
               + _tile_bytes(1, D, 4)                          # bias
               + 2 * NH * _tile_bytes(tq, 1, 4)                # m, l scratch
               + NH * _tile_bytes(tq, DH, 4))                  # acc scratch

    out = pl.pallas_call(
        functools.partial(_attn_kernel, tq=tq, tk=tk, NH=NH, DH=DH),
        out_shape=jax.ShapeDtypeStruct((B, T, D), out_dtype),
        grid_spec=pltpu.PrefetchScalarGridSpec(
            num_scalar_prefetch=2,
            grid=(B, n_steps),
            in_specs=[
                pl.BlockSpec((pl.Squeezed(), NH, tq, DH),
                             lambda b, s, qt, kt: (b, 0, qt[s], 0)),    # Q tile
                pl.BlockSpec((pl.Squeezed(), NH, tk, DH),
                             lambda b, s, qt, kt: (b, 0, kt[s], 0)),    # K tile
                pl.BlockSpec((pl.Squeezed(), NH, tk, DH),
                             lambda b, s, qt, kt: (b, 0, kt[s], 0)),    # V tile
                _single_buffered_spec((D, D), lambda b, s, qt, kt: (0, 0)),  # W_out
                _single_buffered_spec((1, D), lambda b, s, qt, kt: (0, 0)),  # b_out
            ],
            out_specs=pl.BlockSpec((pl.Squeezed(), tq, D),
                                   lambda b, s, qt, kt: (b, qt[s], 0)),
            scratch_shapes=[
                pltpu.VMEM((NH, tq, 1), jnp.float32),    # running max  m
                pltpu.VMEM((NH, tq, 1), jnp.float32),    # running sum  l
                pltpu.VMEM((NH, tq, DH), jnp.float32),   # output accumulator
            ],
        ),
        compiler_params=pltpu.CompilerParams(
            # batch axis shards across TensorCores; the step axis carries the online-
            # softmax state across consecutive kv tiles and must stay sequential.
            dimension_semantics=("parallel", "arbitrary"),
            vmem_limit_bytes=_vmem_limit_bytes(attn_ws)),
    )(qi_tab, ki_tab, q_hm, k_hm, v_hm, w_o, b_o)
    return out


# --------------------------------------------------------------------------- reference
def reference(x, w_qkv, w_out, b_out, num_heads):
    """Pure-JAX reference mirroring the PyTorch forward (eval mode)."""
    B, T, D = x.shape
    NH = num_heads
    DH = D // NH
    qkv = x @ w_qkv
    q, k, v = jnp.split(qkv, 3, axis=-1)
    q = q.reshape(B, T, NH, DH).transpose(0, 2, 1, 3)
    k = k.reshape(B, T, NH, DH).transpose(0, 2, 1, 3)
    v = v.reshape(B, T, NH, DH).transpose(0, 2, 1, 3)
    att = (q @ jnp.swapaxes(k, -2, -1)) * (1.0 / math.sqrt(DH))
    mask = jnp.tril(jnp.ones((T, T), dtype=bool))
    att = jnp.where(mask[None, None], att, -jnp.inf)
    att = jax.nn.softmax(att, axis=-1)
    y = att @ v
    y = y.transpose(0, 2, 1, 3).reshape(B, T, D)
    return y @ w_out + b_out


if __name__ == "__main__":
    # embed_dim=32, num_heads=4, context_length=16, batch=2.  block=8 -> nq=2 tiles, so
    # the init / off-diagonal / diagonal-mask / finalize code paths are all exercised.
    B, T, D, NH = 2, 16, 32, 4

    key = jax.random.PRNGKey(0)
    kx, kqkv, kwo, kbo = jax.random.split(key, 4)
    x = jax.random.normal(kx, (B, T, D), dtype=jnp.float32)
    # PyTorch Linear stores (out, in); we keep the math-friendly (in, out) layout.
    w_qkv = jax.random.normal(kqkv, (D, 3 * D), dtype=jnp.float32) * (1.0 / math.sqrt(D))
    w_out = jax.random.normal(kwo, (D, D), dtype=jnp.float32) * (1.0 / math.sqrt(D))
    b_out = jax.random.normal(kbo, (D,), dtype=jnp.float32) * 0.01

    ref = reference(x, w_qkv, w_out, b_out, NH)

    # f32 MXU operands: tight check against the f32 reference.
    out_f32 = causal_self_attention(x, w_qkv, w_out, b_out, NH,
                                    block_q=8, block_k=8, mxu_dtype=jnp.float32)
    out_f32 = jax.block_until_ready(out_f32)
    assert out_f32.shape == (B, T, D)
    err32 = jnp.max(jnp.abs(out_f32 - ref))
    assert jnp.allclose(out_f32, ref, atol=1e-2, rtol=1e-2), \
        f"f32 mismatch vs reference (max abs err {err32})"

    # default fast path: bf16 MXU operands with f32 accumulation.
    out_bf16 = causal_self_attention(x, w_qkv, w_out, b_out, NH, block_q=8, block_k=8)
    out_bf16 = jax.block_until_ready(out_bf16)
    errbf = jnp.max(jnp.abs(out_bf16 - ref))
    assert jnp.allclose(out_bf16, ref, atol=1e-1, rtol=5e-2), \
        f"bf16 mismatch vs reference (max abs err {errbf})"

    print("KERNEL_OK")
</pallas_src>

<mosaic_0001>
module attributes {stable_mosaic.version = 11 : i64} {
  func.func @_qkv_proj_kernel(%arg0: i32, %arg1: i32, %arg2: memref<1x8x32xf32, #tpu.memory_space<vmem>>, %arg3: memref<32x32xf32, #tpu.memory_space<vmem>>, %arg4: memref<32x32xf32, #tpu.memory_space<vmem>>, %arg5: memref<32x32xf32, #tpu.memory_space<vmem>>, %arg6: memref<1x4x8x8xf32, #tpu.memory_space<vmem>>, %arg7: memref<1x4x8x8xf32, #tpu.memory_space<vmem>>, %arg8: memref<1x4x8x8xf32, #tpu.memory_space<vmem>>) attributes {dimension_semantics = [#tpu.dimension_semantics<parallel>, #tpu.dimension_semantics<parallel>], iteration_bounds = array<i64: 2, 2>, scalar_prefetch = 0 : i64, scratch_operands = 0 : i64, tpu.core_type = #tpu.core_type<tc>, window_params = [{transform_indices = @transform_0, window_bounds = array<i64: 1, 8, 32>}, {pipeline_mode = #tpu.pipeline_mode<synchronous>, transform_indices = @transform_1, window_bounds = array<i64: 32, 32>}, {pipeline_mode = #tpu.pipeline_mode<synchronous>, transform_indices = @transform_2, window_bounds = array<i64: 32, 32>}, {pipeline_mode = #tpu.pipeline_mode<synchronous>, transform_indices = @transform_3, window_bounds = array<i64: 32, 32>}, {transform_indices = @transform_4, window_bounds = array<i64: 1, 4, 8, 8>}, {transform_indices = @transform_5, window_bounds = array<i64: 1, 4, 8, 8>}, {transform_indices = @transform_6, window_bounds = array<i64: 1, 4, 8, 8>}]} {
    %c0 = arith.constant 0 : index
    %c0_0 = arith.constant 0 : index
    %c0_1 = arith.constant 0 : index
    %0 = vector.load %arg2[%c0, %c0_0, %c0_1] : memref<1x8x32xf32, #tpu.memory_space<vmem>>, vector<1x8x32xf32>
    %1 = vector.shape_cast %0 : vector<1x8x32xf32> to vector<8x32xf32>
    %c0_2 = arith.constant 0 : index
    %c0_3 = arith.constant 0 : index
    %2 = vector.load %arg3[%c0_2, %c0_3] : memref<32x32xf32, #tpu.memory_space<vmem>>, vector<32x32xf32>
    %cst = arith.constant dense<0.000000e+00> : vector<8x32xf32>
    %3 = tpu.matmul %1, %2, %cst {dimension_numbers = #tpu.dot_dimension_numbers<[1], [0], [0], [1], [0, 0, 1, 1], [], []>} : vector<8x32xf32>, vector<32x32xf32>, vector<8x32xf32> -> vector<8x32xf32>
    %4 = vector.shape_cast %3 : vector<8x32xf32> to vector<8x4x8xf32>
    %5 = tpu.transpose %4, [1, 0, 2] : vector<8x4x8xf32> -> vector<4x8x8xf32>
    %c0_4 = arith.constant 0 : index
    %c0_5 = arith.constant 0 : index
    %c0_6 = arith.constant 0 : index
    %c0_7 = arith.constant 0 : index
    %6 = vector.load %arg6[%c0_4, %c0_5, %c0_6, %c0_7] : memref<1x4x8x8xf32, #tpu.memory_space<vmem>>, vector<1x4x8x8xf32>
    %7 = vector.shape_cast %6 : vector<1x4x8x8xf32> to vector<4x8x8xf32>
    %8 = vector.shape_cast %5 : vector<4x8x8xf32> to vector<1x4x8x8xf32>
    tpu.vector_store %arg6[%c0_4, %c0_5, %c0_6, %c0_7], %8 {strides = array<i32>} : memref<1x4x8x8xf32, #tpu.memory_space<vmem>>, vector<1x4x8x8xf32>,
    %c0_8 = arith.constant 0 : index
    %c0_9 = arith.constant 0 : index
    %9 = vector.load %arg4[%c0_8, %c0_9] : memref<32x32xf32, #tpu.memory_space<vmem>>, vector<32x32xf32>
    %cst_10 = arith.constant dense<0.000000e+00> : vector<8x32xf32>
    %10 = tpu.matmul %1, %9, %cst_10 {dimension_numbers = #tpu.dot_dimension_numbers<[1], [0], [0], [1], [0, 0, 1, 1], [], []>} : vector<8x32xf32>, vector<32x32xf32>, vector<8x32xf32> -> vector<8x32xf32>
    %11 = vector.shape_cast %10 : vector<8x32xf32> to vector<8x4x8xf32>
    %12 = tpu.transpose %11, [1, 0, 2] : vector<8x4x8xf32> -> vector<4x8x8xf32>
    %c0_11 = arith.constant 0 : index
    %c0_12 = arith.constant 0 : index
    %c0_13 = arith.constant 0 : index
    %c0_14 = arith.constant 0 : index
    %13 = vector.load %arg7[%c0_11, %c0_12, %c0_13, %c0_14] : memref<1x4x8x8xf32, #tpu.memory_space<vmem>>, vector<1x4x8x8xf32>
    %14 = vector.shape_cast %13 : vector<1x4x8x8xf32> to vector<4x8x8xf32>
    %15 = vector.shape_cast %12 : vector<4x8x8xf32> to vector<1x4x8x8xf32>
    tpu.vector_store %arg7[%c0_11, %c0_12, %c0_13, %c0_14], %15 {strides = array<i32>} : memref<1x4x8x8xf32, #tpu.memory_space<vmem>>, vector<1x4x8x8xf32>,
    %c0_15 = arith.constant 0 : index
    %c0_16 = arith.constant 0 : index
    %16 = vector.load %arg5[%c0_15, %c0_16] : memref<32x32xf32, #tpu.memory_space<vmem>>, vector<32x32xf32>
    %cst_17 = arith.constant dense<0.000000e+00> : vector<8x32xf32>
    %17 = tpu.matmul %1, %16, %cst_17 {dimension_numbers = #tpu.dot_dimension_numbers<[1], [0], [0], [1], [0, 0, 1, 1], [], []>} : vector<8x32xf32>, vector<32x32xf32>, vector<8x32xf32> -> vector<8x32xf32>
    %18 = vector.shape_cast %17 : vector<8x32xf32> to vector<8x4x8xf32>
    %19 = tpu.transpose %18, [1, 0, 2] : vector<8x4x8xf32> -> vector<4x8x8xf32>
    %c0_18 = arith.constant 0 : index
    %c0_19 = arith.constant 0 : index
    %c0_20 = arith.constant 0 : index
    %c0_21 = arith.constant 0 : index
    %20 = vector.load %arg8[%c0_18, %c0_19, %c0_20, %c0_21] : memref<1x4x8x8xf32, #tpu.memory_space<vmem>>, vector<1x4x8x8xf32>
    %21 = vector.shape_cast %20 : vector<1x4x8x8xf32> to vector<4x8x8xf32>
    %22 = vector.shape_cast %19 : vector<4x8x8xf32> to vector<1x4x8x8xf32>
    tpu.vector_store %arg8[%c0_18, %c0_19, %c0_20, %c0_21], %22 {strides = array<i32>} : memref<1x4x8x8xf32, #tpu.memory_space<vmem>>, vector<1x4x8x8xf32>,
    return
  }
  func.func @transform_0(%arg0: i32, %arg1: i32) -> (i32, i32, i32) {
    %c0_i32 = arith.constant 0 : i32
    %c0_i32_0 = arith.constant 0 : i32
    return %arg0, %arg1, %c0_i32 : i32, i32, i32
  }
  func.func @transform_1(%arg0: i32, %arg1: i32) -> (i32, i32) {
    %c0_i32 = arith.constant 0 : i32
    %c0_i32_0 = arith.constant 0 : i32
    %c0_i32_1 = arith.constant 0 : i32
    return %c0_i32, %c0_i32_0 : i32, i32
  }
  func.func @transform_2(%arg0: i32, %arg1: i32) -> (i32, i32) {
    %c0_i32 = arith.constant 0 : i32
    %c0_i32_0 = arith.constant 0 : i32
    %c0_i32_1 = arith.constant 0 : i32
    return %c0_i32, %c0_i32_0 : i32, i32
  }
  func.func @transform_3(%arg0: i32, %arg1: i32) -> (i32, i32) {
    %c0_i32 = arith.constant 0 : i32
    %c0_i32_0 = arith.constant 0 : i32
    %c0_i32_1 = arith.constant 0 : i32
    return %c0_i32, %c0_i32_0 : i32, i32
  }
  func.func @transform_4(%arg0: i32, %arg1: i32) -> (i32, i32, i32, i32) {
    %c0_i32 = arith.constant 0 : i32
    %c0_i32_0 = arith.constant 0 : i32
    %c0_i32_1 = arith.constant 0 : i32
    return %arg0, %c0_i32, %arg1, %c0_i32_0 : i32, i32, i32, i32
  }
  func.func @transform_5(%arg0: i32, %arg1: i32) -> (i32, i32, i32, i32) {
    %c0_i32 = arith.constant 0 : i32
    %c0_i32_0 = arith.constant 0 : i32
    %c0_i32_1 = arith.constant 0 : i32
    return %arg0, %c0_i32, %arg1, %c0_i32_0 : i32, i32, i32, i32
  }
  func.func @transform_6(%arg0: i32, %arg1: i32) -> (i32, i32, i32, i32) {
    %c0_i32 = arith.constant 0 : i32
    %c0_i32_0 = arith.constant 0 : i32
    %c0_i32_1 = arith.constant 0 : i32
    return %arg0, %c0_i32, %arg1, %c0_i32_0 : i32, i32, i32, i32
  }
}

</mosaic_0001>

<llo_original>
// kernel: tpu_custom_call.1
$region0: #{tpu_custom_call.1}
  #allocation0 [shape = 'u32[]', space=smem, size = 0x4, offset = 0x4, fixed_abs, tag = 'smem constant byte address 0x4 - core index']
  #allocation1 [shape = 'u32[144,128]{1,0:T(1,128)}', space=vmem, size = 0x12000, scoped, tag = 'internal scratch']
  %s0 = inlined_call_operand.hbm [shape: f32[2,16,32], index: 0, kind: input, shape index: {}]
  %s1 = inlined_call_operand.hbm [shape: f32[32,32], index: 1, kind: input, shape index: {}]
  %s2 = inlined_call_operand.hbm [shape: f32[32,32], index: 2, kind: input, shape index: {}]
  %s3 = inlined_call_operand.hbm [shape: f32[32,32], index: 3, kind: input, shape index: {}]
  %s4 = inlined_call_operand.vmem [shape: f32[2,4,16,8], index: 4, kind: output, shape index: {0}]
  %s5 = inlined_call_operand.vmem [shape: f32[2,4,16,8], index: 5, kind: output, shape index: {1}]
  %s6 = inlined_call_operand.vmem [shape: f32[2,4,16,8], index: 6, kind: output, shape index: {2}]
  %7 = xla_tuple %s4, %s5, %s6
  %s8 = sld [smem:[#allocation0]]
  $region183: #{tpu_custom_call.1} parent=0
    _
  %s10 = ssub.s32 1, %s8
  %s11 = scalar_select 0, %s10, %s8
  $region1: #{tpu_custom_call.1} parent=0
    #allocation2 [shape = 'u8[8192]{0}', space=vmem, size = 0x2000, scoped, tag = 'input window, operand 0']
    #allocation3 [shape = 's32[2]{0}', space=sflag, size = 0x8, scoped, tag = 'scoped memory for tpu_custom_call.1']
    #allocation4 [shape = 'u8[16384]{0}', space=vmem, size = 0x4000, scoped, tag = 'input window, operand 1, single buffered']
    #allocation5 [shape = 's32[1]{0}', space=sflag, size = 0x4, scoped, tag = 'scoped memory for tpu_custom_call.1']
    #allocation6 [shape = 'u8[16384]{0}', space=vmem, size = 0x4000, scoped, tag = 'input window, operand 2, single buffered']
    #allocation7 [shape = 'u8[16384]{0}', space=vmem, size = 0x4000, scoped, tag = 'input window, operand 3, single buffered']
    #allocation8 [shape = 's32[1]{0}', space=sflag, size = 0x4, scoped, tag = 'scoped memory for tpu_custom_call.1']
    #allocation9 [shape = 'u8[32768]{0}', space=vmem, size = 0x8000, scoped, tag = 'output window, operand 0']
    #allocation10 [shape = 'u8[32768]{0}', space=vmem, size = 0x8000, scoped, tag = 'output window, operand 1']
    #allocation11 [shape = 'u8[32768]{0}', space=vmem, size = 0x8000, scoped, tag = 'output window, operand 2']
    %12 = vsyncpa [#allocation3], 0
    %s13 = scalar_lea.sflag [#allocation3], 1
    %14 = vsyncpa %s13, 0
    %15 = vsyncpa [#allocation5], 0
    %16 = vsyncpa [#allocation8], 0
    loop: start=0, step=1, limit=6
    $region2: #{tpu_custom_call.1} parent=1 // loop_pre_header
      _
    $region3: #{tpu_custom_call.1} parent=1 // loop_header
      %s18 = sphi 0, %s22
      %p19 = scmp.ge.s32.totalorder %s18, 6
      %s25 = sphi 0, %s37
      %s26 = sphi 0, %s33
      %s27 = sphi 0, %s25
      %s28 = sphi 0, %s26
      %s29 = sphi 0, %s27
      %s30 = sphi 0, %s28
      %s42 = sphi 0, %s44
      %s45 = sphi 0, %s42
      %s46 = sphi 0, %s45
      %s62 = sphi 0, %s46
      %s66 = sphi 0, %s66
      %s68 = sphi 0, %s66
      %s69 = sphi 0, %s68
      %s83 = sphi 0, %s69
      %s87 = sphi 0, %s87
      %s89 = sphi 0, %s87
      %s90 = sphi 0, %s89
      %s104 = sphi 0, %s90
      %s108 = sphi 0, %s108
      %s110 = sphi 0, %s108
      %s111 = sphi 0, %s110
      %s125 = sphi 0, %s111
      %s133 = sphi 0, %s135
      %s136 = sphi 0, %s133
      %s137 = sphi 0, %s136
      %s153 = sphi 0, %s137
      %s161 = sphi 0, %s163
      %s164 = sphi 0, %s161
      %s165 = sphi 0, %s164
      %s181 = sphi 0, %s165
      %s189 = sphi 0, %s191
      %s192 = sphi 0, %s189
      %s193 = sphi 0, %s192
      %s209 = sphi 0, %s193
    $region4: #{tpu_custom_call.1} parent=1 // loop_header_branch
      %21 = sbr.rel (%p19) target = $region8
    $region5: #{tpu_custom_call.1} parent=1 // loop_body
      %s23 = ssub.s32 %s18, 1
      %s24 = ssub.s32 %s18, 2
      %s31 = sadd.s32 1, %s26
      %p32 = scmp.ge.s32.totalorder %s31, 2
      %s33 = scalar_select %p32, 0, %s31
      %s34 = sadd.s32 1, %s25
      %s35 = scalar_select %p32, %s34, %s25
      %p36 = scmp.ge.s32.totalorder %s35, 2
      %s37 = scalar_select %p36, 0, %s35
      %s38 = ssub.s32 %s25, %s37
      %s39 = ssub.s32 %s26, %s33
      %s40 = sor.u32 %s38, %s39
      %p41 = scmp.eq.s32.totalorder %s40, 0
      %s43 = sadd.s32 %s42, 1
      %s44 = scalar_select %p41, %s42, %s43
      %p47 = pneg %p41
      %p48 = scmp.eq.s32.totalorder %s18, 3
      %p49 = por %p47, %p48
      %p50 = scmp.ne.s32.totalorder %s42, %s45
      %p51 = scmp.eq.s32.totalorder %s18, 0
      %p52 = por %p50, %p51
      %p53 = scmp.ne.s32.totalorder %s42, %s45
      %p54 = scmp.eq.s32.totalorder %s23, 3
      %p55 = por %p53, %p54
      %p56 = scmp.ne.s32.totalorder %s45, %s46
      %p57 = scmp.eq.s32.totalorder %s23, 0
      %p58 = por %p56, %p57
      %p59 = scmp.ne.s32.totalorder %s45, %s46
      %p60 = scmp.eq.s32.totalorder %s24, 3
      %p61 = por %p59, %p60
      %p63 = scmp.ne.s32.totalorder %s46, %s62
      %p64 = scmp.eq.s32.totalorder %s24, 0
      %p65 = por %p63, %p64
      %s67 = sadd.s32 %s66, 1
      %p70 = scmp.eq.s32.totalorder %s18, 3
      %p71 = scmp.ne.s32.totalorder %s66, %s68
      %p72 = scmp.eq.s32.totalorder %s18, 0
      %p73 = por %p71, %p72
      %p74 = scmp.ne.s32.totalorder %s66, %s68
      %p75 = scmp.eq.s32.totalorder %s23, 3
      %p76 = por %p74, %p75
      %p77 = scmp.ne.s32.totalorder %s68, %s69
      %p78 = scmp.eq.s32.totalorder %s23, 0
      %p79 = por %p77, %p78
      %p80 = scmp.ne.s32.totalorder %s68, %s69
      %p81 = scmp.eq.s32.totalorder %s24, 3
      %p82 = por %p80, %p81
      %p84 = scmp.ne.s32.totalorder %s69, %s83
      %p85 = scmp.eq.s32.totalorder %s24, 0
      %p86 = por %p84, %p85
      %s88 = sadd.s32 %s87, 1
      %p91 = scmp.eq.s32.totalorder %s18, 3
      %p92 = scmp.ne.s32.totalorder %s87, %s89
      %p93 = scmp.eq.s32.totalorder %s18, 0
      %p94 = por %p92, %p93
      %p95 = scmp.ne.s32.totalorder %s87, %s89
      %p96 = scmp.eq.s32.totalorder %s23, 3
      %p97 = por %p95, %p96
      %p98 = scmp.ne.s32.totalorder %s89, %s90
      %p99 = scmp.eq.s32.totalorder %s23, 0
      %p100 = por %p98, %p99
      %p101 = scmp.ne.s32.totalorder %s89, %s90
      %p102 = scmp.eq.s32.totalorder %s24, 3
      %p103 = por %p101, %p102
      %p105 = scmp.ne.s32.totalorder %s90, %s104
      %p106 = scmp.eq.s32.totalorder %s24, 0
      %p107 = por %p105, %p106
      %s109 = sadd.s32 %s108, 1
      %p112 = scmp.eq.s32.totalorder %s18, 3
      %p113 = scmp.ne.s32.totalorder %s108, %s110
      %p114 = scmp.eq.s32.totalorder %s18, 0
      %p115 = por %p113, %p114
      %p116 = scmp.ne.s32.totalorder %s108, %s110
      %p117 = scmp.eq.s32.totalorder %s23, 3
      %p118 = por %p116, %p117
      %p119 = scmp.ne.s32.totalorder %s110, %s111
      %p120 = scmp.eq.s32.totalorder %s23, 0
      %p121 = por %p119, %p120
      %p122 = scmp.ne.s32.totalorder %s110, %s111
      %p123 = scmp.eq.s32.totalorder %s24, 3
      %p124 = por %p122, %p123
      %p126 = scmp.ne.s32.totalorder %s111, %s125
      %p127 = scmp.eq.s32.totalorder %s24, 0
      %p128 = por %p126, %p127
      %s129 = ssub.s32 %s25, %s37
      %s130 = ssub.s32 %s26, %s33
      %s131 = sor.u32 %s129, %s130
      %p132 = scmp.eq.s32.totalorder %s131, 0
      %s134 = sadd.s32 %s133, 1
      %s135 = scalar_select %p132, %s133, %s134
      %p138 = pneg %p132
      %p139 = scmp.eq.s32.totalorder %s18, 3
      %p140 = por %p138, %p139
      %p141 = scmp.ne.s32.totalorder %s133, %s136
      %p142 = scmp.eq.s32.totalorder %s18, 0
      %p143 = por %p141, %p142
      %p144 = scmp.ne.s32.totalorder %s133, %s136
      %p145 = scmp.eq.s32.totalorder %s23, 3
      %p146 = por %p144, %p145
      %p147 = scmp.ne.s32.totalorder %s136, %s137
      %p148 = scmp.eq.s32.totalorder %s23, 0
      %p149 = por %p147, %p148
      %p150 = scmp.ne.s32.totalorder %s136, %s137
      %p151 = scmp.eq.s32.totalorder %s24, 3
      %p152 = por %p150, %p151
      %p154 = scmp.ne.s32.totalorder %s137, %s153
      %p155 = scmp.eq.s32.totalorder %s24, 0
      %p156 = por %p154, %p155
      %s157 = ssub.s32 %s25, %s37
      %s158 = ssub.s32 %s26, %s33
      %s159 = sor.u32 %s157, %s158
      %p160 = scmp.eq.s32.totalorder %s159, 0
      %s162 = sadd.s32 %s161, 1
      %s163 = scalar_select %p160, %s161, %s162
      %p166 = pneg %p160
      %p167 = scmp.eq.s32.totalorder %s18, 3
      %p168 = por %p166, %p167
      %p169 = scmp.ne.s32.totalorder %s161, %s164
      %p170 = scmp.eq.s32.totalorder %s18, 0
      %p171 = por %p169, %p170
      %p172 = scmp.ne.s32.totalorder %s161, %s164
      %p173 = scmp.eq.s32.totalorder %s23, 3
      %p174 = por %p172, %p173
      %p175 = scmp.ne.s32.totalorder %s164, %s165
      %p176 = scmp.eq.s32.totalorder %s23, 0
      %p177 = por %p175, %p176
      %p178 = scmp.ne.s32.totalorder %s164, %s165
      %p179 = scmp.eq.s32.totalorder %s24, 3
      %p180 = por %p178, %p179
      %p182 = scmp.ne.s32.totalorder %s165, %s181
      %p183 = scmp.eq.s32.totalorder %s24, 0
      %p184 = por %p182, %p183
      %s185 = ssub.s32 %s25, %s37
      %s186 = ssub.s32 %s26, %s33
      %s187 = sor.u32 %s185, %s186
      %p188 = scmp.eq.s32.totalorder %s187, 0
      %s190 = sadd.s32 %s189, 1
      %s191 = scalar_select %p188, %s189, %s190
      %p194 = pneg %p188
      %p195 = scmp.eq.s32.totalorder %s18, 3
      %p196 = por %p194, %p195
      %p197 = scmp.ne.s32.totalorder %s189, %s192
      %p198 = scmp.eq.s32.totalorder %s18, 0
      %p199 = por %p197, %p198
      %p200 = scmp.ne.s32.totalorder %s189, %s192
      %p201 = scmp.eq.s32.totalorder %s23, 3
      %p202 = por %p200, %p201
      %p203 = scmp.ne.s32.totalorder %s192, %s193
      %p204 = scmp.eq.s32.totalorder %s23, 0
      %p205 = por %p203, %p204
      %p206 = scmp.ne.s32.totalorder %s192, %s193
      %p207 = scmp.eq.s32.totalorder %s24, 3
      %p208 = por %p206, %p207
      %p210 = scmp.ne.s32.totalorder %s193, %s209
      %p211 = scmp.eq.s32.totalorder %s24, 0
      %p212 = por %p210, %p211
      %p213 = scmp.le.s32.totalorder 1, %s18
      %p214 = scmp.lt.s32.totalorder %s18, 5
      %p215 = pnand %p213, %p214
      %p216 = pneg %p215
      // Predicated region
      $region9: #{tpu_custom_call.1} parent=5 // pred_check
        _
      $region10: #{tpu_custom_call.1} parent=5 // pred_check_branch
        %218 = sbr.rel (%p215) target = $region12
      $region11: #{tpu_custom_call.1} parent=5 // pred_region
        %s219 = ssub.s32 %s18, 1
        // Predicated region
        $region13: #{tpu_custom_call.1} parent=11 // pred_check
          %p220 = pneg %p79
        $region14: #{tpu_custom_call.1} parent=11 // pred_check_branch
          %222 = sbr.rel (%p220) target = $region16
        $region15: #{tpu_custom_call.1} parent=11 // pred_region
          %s224 = ssub.s32 512, 512
          %225 = vsyncadd [#allocation5], %s224
          %s226 = sshll.u32 [#allocation4], 4
          %s227 = int_to_ptr.vmem [resolvable:$true] %s226
          %232 = dma.hbm_to_vmem [thread:$0]  %s1, 512, %s227, [#allocation5], 128, 128, 8
        $region16: #{tpu_custom_call.1} parent=11 // pred_fallthru
          _
        // Predicated region
        $region17: #{tpu_custom_call.1} parent=11 // pred_check
          %p233 = pneg %p100
        $region18: #{tpu_custom_call.1} parent=11 // pred_check_branch
          %235 = sbr.rel (%p233) target = $region20
        $region19: #{tpu_custom_call.1} parent=11 // pred_region
          %s237 = ssub.s32 512, 512
          %238 = vsyncadd [#allocation5], %s237
          %s239 = sshll.u32 [#allocation6], 4
          %s240 = int_to_ptr.vmem [resolvable:$true] %s239
          %245 = dma.hbm_to_vmem [thread:$0]  %s2, 512, %s240, [#allocation5], 128, 128, 8
        $region20: #{tpu_custom_call.1} parent=11 // pred_fallthru
          _
        // Predicated region
        $region21: #{tpu_custom_call.1} parent=11 // pred_check
          %p246 = pneg %p121
        $region22: #{tpu_custom_call.1} parent=11 // pred_check_branch
          %248 = sbr.rel (%p246) target = $region24
        $region23: #{tpu_custom_call.1} parent=11 // pred_region
          %s250 = ssub.s32 512, 512
          %251 = vsyncadd [#allocation8], %s250
          %s252 = sshll.u32 [#allocation7], 4
          %s253 = int_to_ptr.vmem [resolvable:$true] %s252
          %258 = dma.hbm_to_vmem [thread:$0]  %s3, 512, %s253, [#allocation8], 128, 128, 8
        $region24: #{tpu_custom_call.1} parent=11 // pred_fallthru
          _
      $region12: #{tpu_custom_call.1} parent=5 // pred_fallthru
        _
      %p259 = scmp.lt.s32.totalorder %s18, 4
      // Predicated region
      $region25: #{tpu_custom_call.1} parent=5 // pred_check
        %p260 = pneg %p259
      $region26: #{tpu_custom_call.1} parent=5 // pred_check_branch
        %262 = sbr.rel (%p260) target = $region28
      $region27: #{tpu_custom_call.1} parent=5 // pred_region
        // Predicated region
        $region29: #{tpu_custom_call.1} parent=27 // pred_check
          %p263 = pneg %p52
        $region30: #{tpu_custom_call.1} parent=27 // pred_check_branch
          %265 = sbr.rel (%p263) target = $region32
        $region31: #{tpu_custom_call.1} parent=27 // pred_region
          %s266 = sand.u32 %s42, 1
          %s267 = scalar_lea.sflag [#allocation3], %s266
          %s268 = sand.u32 %s42, 1
          %s269 = smul.addr %s268, 8
          %s270 = scalar_lea.vmem [#allocation2], %s269
          %s272 = ssub.s32 128, 128
          %273 = vsyncadd %s267, %s272
          %s274 = smul.addr %s25, 2
          %s275 = sadd.s32 %s26, %s274
          %s276 = smul.addr %s275, 128
          %s277 = scalar_lea.hbm %s0, %s276
          %s279 = sshll.u32 %s270, 4
          %s280 = int_to_ptr.vmem [resolvable:$true] %s279
          %282 = dma.hbm_to_vmem [thread:$0]  %s277, 128, %s280, %s267
        $region32: #{tpu_custom_call.1} parent=27 // pred_fallthru
          _
      $region28: #{tpu_custom_call.1} parent=5 // pred_fallthru
        _
      %p283 = scmp.le.s32.totalorder 1, %s18
      %p284 = scmp.lt.s32.totalorder %s18, 5
      %p285 = pnand %p283, %p284
      %p286 = pneg %p285
      // Predicated region
      $region33: #{tpu_custom_call.1} parent=5 // pred_check
        _
      $region34: #{tpu_custom_call.1} parent=5 // pred_check_branch
        %288 = sbr.rel (%p285) target = $region36
      $region35: #{tpu_custom_call.1} parent=5 // pred_region
        %s289 = ssub.s32 %s18, 1
        %s290 = sand.u32 %s45, 1
        %s291 = scalar_lea.sflag [#allocation3], %s290
        %s292 = sand.u32 %s45, 1
        %s293 = smul.addr %s292, 8
        %s294 = scalar_lea.vmem [#allocation2], %s293
        // Predicated region
        $region37: #{tpu_custom_call.1} parent=35 // pred_check
          %p295 = pneg %p58
        $region38: #{tpu_custom_call.1} parent=35 // pred_check_branch
          %297 = sbr.rel (%p295) target = $region40
        $region39: #{tpu_custom_call.1} parent=35 // pred_region
          %298 = dma.done %s291, 128
        $region40: #{tpu_custom_call.1} parent=35 // pred_fallthru
          _
        // Predicated region
        $region41: #{tpu_custom_call.1} parent=35 // pred_check
          %p299 = pneg %p79
        $region42: #{tpu_custom_call.1} parent=35 // pred_check_branch
          %301 = sbr.rel (%p299) target = $region44
        $region43: #{tpu_custom_call.1} parent=35 // pred_region
          %302 = dma.done [#allocation5], 512
        $region44: #{tpu_custom_call.1} parent=35 // pred_fallthru
          _
        // Predicated region
        $region45: #{tpu_custom_call.1} parent=35 // pred_check
          %p303 = pneg %p100
        $region46: #{tpu_custom_call.1} parent=35 // pred_check_branch
          %305 = sbr.rel (%p303) target = $region48
        $region47: #{tpu_custom_call.1} parent=35 // pred_region
          %306 = dma.done [#allocation5], 512
        $region48: #{tpu_custom_call.1} parent=35 // pred_fallthru
          _
        // Predicated region
        $region49: #{tpu_custom_call.1} parent=35 // pred_check
          %p307 = pneg %p121
        $region50: #{tpu_custom_call.1} parent=35 // pred_check_branch
          %309 = sbr.rel (%p307) target = $region52
        $region51: #{tpu_custom_call.1} parent=35 // pred_region
          %310 = dma.done [#allocation8], 512
        $region52: #{tpu_custom_call.1} parent=35 // pred_fallthru
          _
        %s311 = sand.u32 %s45, 1
        %s312 = scalar_lea.sflag [#allocation3], %s311
        %s313 = sand.u32 %s45, 1
        %s314 = smul.addr %s313, 8
        %s315 = scalar_lea.vmem [#allocation2], %s314
        %p316 = pneg %p58
        %p317 = pneg %p55
        %p318 = pneg %p79
        %p319 = pneg %p76
        %p320 = pneg %p100
        %p321 = pneg %p97
        %p322 = pneg %p121
        %p323 = pneg %p118
        %p324 = pneg %p149
        %p325 = pneg %p146
        %s326 = sand.u32 %s136, 1
        %s327 = sand.u32 %s136, 1
        %s328 = smul.addr %s327, 32
        %s329 = scalar_lea.vmem [#allocation9], %s328
        %p330 = pneg %p177
        %p331 = pneg %p174
        %s332 = sand.u32 %s164, 1
        %s333 = sand.u32 %s164, 1
        %s334 = smul.addr %s333, 32
        %s335 = scalar_lea.vmem [#allocation10], %s334
        %p336 = pneg %p205
        %p337 = pneg %p202
        %s338 = sand.u32 %s192, 1
        %s339 = sand.u32 %s192, 1
        %s340 = smul.addr %s339, 32
        %s341 = scalar_lea.vmem [#allocation11], %s340
        %v342 = vld [vmem:[%s294] sm:$0xff]
        %v343 = vld [vmem:[#allocation4] sm:$0xff]
        %v344 = vld [vmem:[#allocation4 + $0x8] sm:$0xff]
        %v345 = vld [vmem:[#allocation4 + $0x10] sm:$0xff]
        %v346 = vld [vmem:[#allocation4 + $0x18] sm:$0xff]
        %vm347 = vcmask 261120
        %v349 = vsel %vm347, %v342, 0
        %351 = vmatprep.subr.mxu0 0.0
        %352 = vmatpush1.msra.mxu0 %v343
        %353 = vmatprep.subr.mxu0 0.0
        %354 = vmatpush1.msra.mxu0 %v344
        %355 = vmatprep.subr.mxu0 0.0
        %356 = vmatpush1.msra.mxu0 %v345
        %357 = vmatprep.subr.mxu0 0.0
        %358 = vmatpush1.msra.mxu0 %v346
        %359 = vmatprep.subr.mxu0 0.0
        %360 = vmatpush1.msra.mxu0 0.0
        %361 = vmatprep.subr.mxu0 0.0
        %362 = vmatpush1.msra.mxu0 0.0
        %363 = vmatprep.subr.mxu0 0.0
        %364 = vmatpush1.msra.mxu0 0.0
        %365 = vmatprep.subr.mxu0 0.0
        %366 = vmatpush1.msra.mxu0 0.0
        %367 = vmatprep.subr.mxu0 0.0
        %368 = vmatpush1.msra.mxu0 0.0
        %369 = vmatprep.subr.mxu0 0.0
        %370 = vmatpush1.msra.mxu0 0.0
        %371 = vmatprep.subr.mxu0 0.0
        %372 = vmatpush1.msra.mxu0 0.0
        %373 = vmatprep.subr.mxu0 0.0
        %374 = vmatpush1.msra.mxu0 0.0
        %375 = vmatprep.subr.mxu0 0.0
        %376 = vmatpush1.msra.mxu0 0.0
        %377 = vmatprep.subr.mxu0 0.0
        %378 = vmatpush1.msra.mxu0 0.0
        %379 = vmatprep.subr.mxu0 0.0
        %380 = vmatpush1.msra.mxu0 0.0
        %381 = vmatprep.subr.mxu0 0.0
        %382 = vmatpush1.msra.mxu0 0.0
        %383 = vmatprep.subr.mxu0 0.0
        %384 = vmatpush1.msra.mxu0 0.0
        %385 = vmatprep.subr.mxu0 0.0
        %386 = vmatpush1.msra.mxu0 0.0
        %387 = vmatprep.subr.mxu0 0.0
        %388 = vmatpush1.msra.mxu0 0.0
        %389 = vmatprep.subr.mxu0 0.0
        %390 = vmatpush1.msra.mxu0 0.0
        %391 = vmatprep.subr.mxu0 0.0
        %392 = vmatpush1.msra.mxu0 0.0
        %393 = vmatprep.subr.mxu0 0.0
        %394 = vmatpush1.msra.mxu0 0.0
        %395 = vmatprep.subr.mxu0 0.0
        %396 = vmatpush1.msra.mxu0 0.0
        %397 = vmatprep.subr.mxu0 0.0
        %398 = vmatpush1.msra.mxu0 0.0
        %399 = vmatprep.subr.mxu0 0.0
        %400 = vmatpush1.msra.mxu0 0.0
        %401 = vmatprep.subr.mxu0 0.0
        %402 = vmatpush1.msra.mxu0 0.0
        %403 = vmatprep.subr.mxu0 0.0
        %404 = vmatpush1.msra.mxu0 0.0
        %405 = vmatprep.subr.mxu0 0.0
        %406 = vmatpush1.msra.mxu0 0.0
        %407 = vmatprep.subr.mxu0 0.0
        %408 = vmatpush1.msra.mxu0 0.0
        %409 = vmatprep.subr.mxu0 0.0
        %410 = vmatpush1.msra.mxu0 0.0
        %411 = vmatprep.subr.mxu0 0.0
        %412 = vmatpush1.msra.mxu0 0.0
        %413 = vmatprep.subr.mxu0 0.0
        %414 = vmatpush1.msra.mxu0 0.0
        %415 = vmatprep.mubr.f32.mxu0 0.0
        %416 = vmatmul.mubr.f32.gmra.mrb[0].mxu0 %v349
        %v417 = vpop.f32.mrb[0].mxu0
        %v418 = vadd.f32 0.0, %v417
        %v419 = vpop.f32.mrb[0].mxu0
        %420 = vdwg.mxu0
        %422 = vrot.lane.b32.xlu0 %v418, 120
        %v423 = vpop.permute.xlu0 %422
        %425 = vrot.lane.b32.xlu0 %v418, 112
        %v426 = vpop.permute.xlu0 %425
        %428 = vrot.lane.b32.xlu0 %v418, 104
        %v429 = vpop.permute.xlu0 %428
        %v431 = vcombine.low %v418, %v426
        %v432 = vcombine.high %v418, %v426
        %v434 = vunpack.c.l.s4 1983009808
        %v435 = vunpack.c.0.s8 %v434
        %v436 = vlaneseq
        %v437 = vshrl.u32 %v436, 7
        %v438 = vsub.s32 %v435, %v437
        %v439 = vrot.slane %v431, %v438
        %v441 = vunpack.c.l.s4 1983009808
        %v442 = vunpack.c.0.s8 %v441
        %v443 = vlaneseq
        %v444 = vshrl.u32 %v443, 7
        %v445 = vsub.s32 %v442, %v444
        %v446 = vrot.slane %v432, %v445
        %v447 = vcombine.low %v423, %v429
        %v448 = vcombine.high %v423, %v429
        %v450 = vunpack.c.l.s4 1983009808
        %v451 = vunpack.c.0.s8 %v450
        %v452 = vlaneseq
        %v453 = vshrl.u32 %v452, 7
        %v454 = vsub.s32 %v451, %v453
        %v455 = vrot.slane %v447, %v454
        %v457 = vunpack.c.l.s4 1983009808
        %v458 = vunpack.c.0.s8 %v457
        %v459 = vlaneseq
        %v460 = vshrl.u32 %v459, 7
        %v461 = vsub.s32 %v458, %v460
        %v462 = vrot.slane %v448, %v461
        %v463 = vcombine.low %v439, %v455
        %v464 = vcombine.high %v439, %v455
        %v466 = vunpack.c.l.s4 1934713408
        %v467 = vunpack.c.0.s8 %v466
        %v468 = vlaneseq
        %v469 = vshrl.u32 %v468, 7
        %v470 = vsub.s32 %v467, %v469
        %v471 = vrot.slane %v463, %v470
        %v473 = vunpack.c.l.s4 1934713408
        %v474 = vunpack.c.0.s8 %v473
        %v475 = vlaneseq
        %v476 = vshrl.u32 %v475, 7
        %v477 = vsub.s32 %v474, %v476
        %v478 = vrot.slane %v464, %v477
        %v479 = vcombine.low %v446, %v462
        %v480 = vcombine.high %v446, %v462
        %v482 = vunpack.c.l.s4 1934713408
        %v483 = vunpack.c.0.s8 %v482
        %v484 = vlaneseq
        %v485 = vshrl.u32 %v484, 7
        %v486 = vsub.s32 %v483, %v485
        %v487 = vrot.slane %v479, %v486
        %v489 = vunpack.c.l.s4 1934713408
        %v490 = vunpack.c.0.s8 %v489
        %v491 = vlaneseq
        %v492 = vshrl.u32 %v491, 7
        %v493 = vsub.s32 %v490, %v492
        %v494 = vrot.slane %v480, %v493
        %v495 = vcombine.high %v471, 0.0
        %v496 = vcombine.high %v478, 0.0
        %v497 = vcombine.high %v487, 0.0
        %v498 = vcombine.high %v494, 0.0
        %v499 = vcombine.low %v471, %v478
        %v501 = vunpack.c.l.s4 1983009808
        %v502 = vunpack.c.0.s8 %v501
        %v503 = vlaneseq
        %v504 = vshrl.u32 %v503, 7
        %v505 = vsub.s32 %v502, %v504
        %v506 = vrot.slane %v499, %v505
        %v507 = vcombine.low %v495, %v496
        %v509 = vunpack.c.l.s4 1983009808
        %v510 = vunpack.c.0.s8 %v509
        %v511 = vlaneseq
        %v512 = vshrl.u32 %v511, 7
        %v513 = vsub.s32 %v510, %v512
        %v514 = vrot.slane %v507, %v513
        %v515 = vcombine.low %v487, %v494
        %v517 = vunpack.c.l.s4 1983009808
        %v518 = vunpack.c.0.s8 %v517
        %v519 = vlaneseq
        %v520 = vshrl.u32 %v519, 7
        %v521 = vsub.s32 %v518, %v520
        %v522 = vrot.slane %v515, %v521
        %v523 = vcombine.low %v497, %v498
        %v525 = vunpack.c.l.s4 1983009808
        %v526 = vunpack.c.0.s8 %v525
        %v527 = vlaneseq
        %v528 = vshrl.u32 %v527, 7
        %v529 = vsub.s32 %v526, %v528
        %v530 = vrot.slane %v523, %v529
        %v531 = vcombine.low %v506, %v514
        %v532 = vcombine.high %v506, %v514
        %v534 = vunpack.c.l.s4 1934713408
        %v535 = vunpack.c.0.s8 %v534
        %v536 = vlaneseq
        %v537 = vshrl.u32 %v536, 7
        %v538 = vsub.s32 %v535, %v537
        %v539 = vrot.slane %v531, %v538
        %v541 = vunpack.c.l.s4 1934713408
        %v542 = vunpack.c.0.s8 %v541
        %v543 = vlaneseq
        %v544 = vshrl.u32 %v543, 7
        %v545 = vsub.s32 %v542, %v544
        %v546 = vrot.slane %v532, %v545
        %v547 = vcombine.low %v522, %v530
        %v548 = vcombine.high %v522, %v530
        %v550 = vunpack.c.l.s4 1934713408
        %v551 = vunpack.c.0.s8 %v550
        %v552 = vlaneseq
        %v553 = vshrl.u32 %v552, 7
        %v554 = vsub.s32 %v551, %v553
        %v555 = vrot.slane %v547, %v554
        %v557 = vunpack.c.l.s4 1934713408
        %v558 = vunpack.c.0.s8 %v557
        %v559 = vlaneseq
        %v560 = vshrl.u32 %v559, 7
        %v561 = vsub.s32 %v558, %v560
        %v562 = vrot.slane %v548, %v561
        %v563 = vcombine.low %v539, %v555
        %v564 = vcombine.high %v539, %v555
        %v565 = vcombine.low %v546, %v562
        %v566 = vcombine.high %v546, %v562
        %vm567 = vcmask 64512
        %568 = vst.msk [vmem:[%s329] sm:$0xff] %vm567, %v563
        %569 = vst.msk [vmem:[%s329 + $0x8] sm:$0xff] %vm567, %v564
        %570 = vst.msk [vmem:[%s329 + $0x10] sm:$0xff] %vm567, %v565
        %571 = vst.msk [vmem:[%s329 + $0x18] sm:$0xff] %vm567, %v566
        %v572 = vld [vmem:[#allocation6] sm:$0xff]
        %v573 = vld [vmem:[#allocation6 + $0x8] sm:$0xff]
        %v574 = vld [vmem:[#allocation6 + $0x10] sm:$0xff]
        %v575 = vld [vmem:[#allocation6 + $0x18] sm:$0xff]
        %576 = vmatprep.subr.mxu0 0.0
        %577 = vmatpush1.msra.mxu0 %v572
        %578 = vmatprep.subr.mxu0 0.0
        %579 = vmatpush1.msra.mxu0 %v573
        %580 = vmatprep.subr.mxu0 0.0
        %581 = vmatpush1.msra.mxu0 %v574
        %582 = vmatprep.subr.mxu0 0.0
        %583 = vmatpush1.msra.mxu0 %v575
        %584 = vmatprep.subr.mxu0 0.0
        %585 = vmatpush1.msra.mxu0 0.0
        %586 = vmatprep.subr.mxu0 0.0
        %587 = vmatpush1.msra.mxu0 0.0
        %588 = vmatprep.subr.mxu0 0.0
        %589 = vmatpush1.msra.mxu0 0.0
        %590 = vmatprep.subr.mxu0 0.0
        %591 = vmatpush1.msra.mxu0 0.0
        %592 = vmatprep.subr.mxu0 0.0
        %593 = vmatpush1.msra.mxu0 0.0
        %594 = vmatprep.subr.mxu0 0.0
        %595 = vmatpush1.msra.mxu0 0.0
        %596 = vmatprep.subr.mxu0 0.0
        %597 = vmatpush1.msra.mxu0 0.0
        %598 = vmatprep.subr.mxu0 0.0
        %599 = vmatpush1.msra.mxu0 0.0
        %600 = vmatprep.subr.mxu0 0.0
        %601 = vmatpush1.msra.mxu0 0.0
        %602 = vmatprep.subr.mxu0 0.0
        %603 = vmatpush1.msra.mxu0 0.0
        %604 = vmatprep.subr.mxu0 0.0
        %605 = vmatpush1.msra.mxu0 0.0
        %606 = vmatprep.subr.mxu0 0.0
        %607 = vmatpush1.msra.mxu0 0.0
        %608 = vmatprep.subr.mxu0 0.0
        %609 = vmatpush1.msra.mxu0 0.0
        %610 = vmatprep.subr.mxu0 0.0
        %611 = vmatpush1.msra.mxu0 0.0
        %612 = vmatprep.subr.mxu0 0.0
        %613 = vmatpush1.msra.mxu0 0.0
        %614 = vmatprep.subr.mxu0 0.0
        %615 = vmatpush1.msra.mxu0 0.0
        %616 = vmatprep.subr.mxu0 0.0
        %617 = vmatpush1.msra.mxu0 0.0
        %618 = vmatprep.subr.mxu0 0.0
        %619 = vmatpush1.msra.mxu0 0.0
        %620 = vmatprep.subr.mxu0 0.0
        %621 = vmatpush1.msra.mxu0 0.0
        %622 = vmatprep.subr.mxu0 0.0
        %623 = vmatpush1.msra.mxu0 0.0
        %624 = vmatprep.subr.mxu0 0.0
        %625 = vmatpush1.msra.mxu0 0.0
        %626 = vmatprep.subr.mxu0 0.0
        %627 = vmatpush1.msra.mxu0 0.0
        %628 = vmatprep.subr.mxu0 0.0
        %629 = vmatpush1.msra.mxu0 0.0
        %630 = vmatprep.subr.mxu0 0.0
        %631 = vmatpush1.msra.mxu0 0.0
        %632 = vmatprep.subr.mxu0 0.0
        %633 = vmatpush1.msra.mxu0 0.0
        %634 = vmatprep.subr.mxu0 0.0
        %635 = vmatpush1.msra.mxu0 0.0
        %636 = vmatprep.subr.mxu0 0.0
        %637 = vmatpush1.msra.mxu0 0.0
        %638 = vmatprep.subr.mxu0 0.0
        %639 = vmatpush1.msra.mxu0 0.0
        %640 = vmatprep.mubr.f32.mxu0 0.0
        %641 = vmatmul.mubr.f32.gmra.mrb[0].mxu0 %v349
        %v642 = vpop.f32.mrb[0].mxu0
        %v643 = vadd.f32 0.0, %v642
        %v644 = vpop.f32.mrb[0].mxu0
        %645 = vdwg.mxu0
        %647 = vrot.lane.b32.xlu0 %v643, 120
        %v648 = vpop.permute.xlu0 %647
        %650 = vrot.lane.b32.xlu0 %v643, 112
        %v651 = vpop.permute.xlu0 %650
        %653 = vrot.lane.b32.xlu0 %v643, 104
        %v654 = vpop.permute.xlu0 %653
        %v656 = vcombine.low %v643, %v651
        %v657 = vcombine.high %v643, %v651
        %v659 = vunpack.c.l.s4 1983009808
        %v660 = vunpack.c.0.s8 %v659
        %v661 = vlaneseq
        %v662 = vshrl.u32 %v661, 7
        %v663 = vsub.s32 %v660, %v662
        %v664 = vrot.slane %v656, %v663
        %v666 = vunpack.c.l.s4 1983009808
        %v667 = vunpack.c.0.s8 %v666
        %v668 = vlaneseq
        %v669 = vshrl.u32 %v668, 7
        %v670 = vsub.s32 %v667, %v669
        %v671 = vrot.slane %v657, %v670
        %v672 = vcombine.low %v648, %v654
        %v673 = vcombine.high %v648, %v654
        %v675 = vunpack.c.l.s4 1983009808
        %v676 = vunpack.c.0.s8 %v675
        %v677 = vlaneseq
        %v678 = vshrl.u32 %v677, 7
        %v679 = vsub.s32 %v676, %v678
        %v680 = vrot.slane %v672, %v679
        %v682 = vunpack.c.l.s4 1983009808
        %v683 = vunpack.c.0.s8 %v682
        %v684 = vlaneseq
        %v685 = vshrl.u32 %v684, 7
        %v686 = vsub.s32 %v683, %v685
        %v687 = vrot.slane %v673, %v686
        %v688 = vcombine.low %v664, %v680
        %v689 = vcombine.high %v664, %v680
        %v691 = vunpack.c.l.s4 1934713408
        %v692 = vunpack.c.0.s8 %v691
        %v693 = vlaneseq
        %v694 = vshrl.u32 %v693, 7
        %v695 = vsub.s32 %v692, %v694
        %v696 = vrot.slane %v688, %v695
        %v698 = vunpack.c.l.s4 1934713408
        %v699 = vunpack.c.0.s8 %v698
        %v700 = vlaneseq
        %v701 = vshrl.u32 %v700, 7
        %v702 = vsub.s32 %v699, %v701
        %v703 = vrot.slane %v689, %v702
        %v704 = vcombine.low %v671, %v687
        %v705 = vcombine.high %v671, %v687
        %v707 = vunpack.c.l.s4 1934713408
        %v708 = vunpack.c.0.s8 %v707
        %v709 = vlaneseq
        %v710 = vshrl.u32 %v709, 7
        %v711 = vsub.s32 %v708, %v710
        %v712 = vrot.slane %v704, %v711
        %v714 = vunpack.c.l.s4 1934713408
        %v715 = vunpack.c.0.s8 %v714
        %v716 = vlaneseq
        %v717 = vshrl.u32 %v716, 7
        %v718 = vsub.s32 %v715, %v717
        %v719 = vrot.slane %v705, %v718
        %v720 = vcombine.high %v696, 0.0
        %v721 = vcombine.high %v703, 0.0
        %v722 = vcombine.high %v712, 0.0
        %v723 = vcombine.high %v719, 0.0
        %v724 = vcombine.low %v696, %v703
        %v726 = vunpack.c.l.s4 1983009808
        %v727 = vunpack.c.0.s8 %v726
        %v728 = vlaneseq
        %v729 = vshrl.u32 %v728, 7
        %v730 = vsub.s32 %v727, %v729
        %v731 = vrot.slane %v724, %v730
        %v732 = vcombine.low %v720, %v721
        %v734 = vunpack.c.l.s4 1983009808
        %v735 = vunpack.c.0.s8 %v734
        %v736 = vlaneseq
        %v737 = vshrl.u32 %v736, 7
        %v738 = vsub.s32 %v735, %v737
        %v739 = vrot.slane %v732, %v738
        %v740 = vcombine.low %v712, %v719
        %v742 = vunpack.c.l.s4 1983009808
        %v743 = vunpack.c.0.s8 %v742
        %v744 = vlaneseq
        %v745 = vshrl.u32 %v744, 7
        %v746 = vsub.s32 %v743, %v745
        %v747 = vrot.slane %v740, %v746
        %v748 = vcombine.low %v722, %v723
        %v750 = vunpack.c.l.s4 1983009808
        %v751 = vunpack.c.0.s8 %v750
        %v752 = vlaneseq
        %v753 = vshrl.u32 %v752, 7
        %v754 = vsub.s32 %v751, %v753
        %v755 = vrot.slane %v748, %v754
        %v756 = vcombine.low %v731, %v739
        %v757 = vcombine.high %v731, %v739
        %v759 = vunpack.c.l.s4 1934713408
        %v760 = vunpack.c.0.s8 %v759
        %v761 = vlaneseq
        %v762 = vshrl.u32 %v761, 7
        %v763 = vsub.s32 %v760, %v762
        %v764 = vrot.slane %v756, %v763
        %v766 = vunpack.c.l.s4 1934713408
        %v767 = vunpack.c.0.s8 %v766
        %v768 = vlaneseq
        %v769 = vshrl.u32 %v768, 7
        %v770 = vsub.s32 %v767, %v769
        %v771 = vrot.slane %v757, %v770
        %v772 = vcombine.low %v747, %v755
        %v773 = vcombine.high %v747, %v755
        %v775 = vunpack.c.l.s4 1934713408
        %v776 = vunpack.c.0.s8 %v775
        %v777 = vlaneseq
        %v778 = vshrl.u32 %v777, 7
        %v779 = vsub.s32 %v776, %v778
        %v780 = vrot.slane %v772, %v779
        %v782 = vunpack.c.l.s4 1934713408
        %v783 = vunpack.c.0.s8 %v782
        %v784 = vlaneseq
        %v785 = vshrl.u32 %v784, 7
        %v786 = vsub.s32 %v783, %v785
        %v787 = vrot.slane %v773, %v786
        %v788 = vcombine.low %v764, %v780
        %v789 = vcombine.high %v764, %v780
        %v790 = vcombine.low %v771, %v787
        %v791 = vcombine.high %v771, %v787
        %792 = vst.msk [vmem:[%s335] sm:$0xff] %vm567, %v788
        %793 = vst.msk [vmem:[%s335 + $0x8] sm:$0xff] %vm567, %v789
        %794 = vst.msk [vmem:[%s335 + $0x10] sm:$0xff] %vm567, %v790
        %795 = vst.msk [vmem:[%s335 + $0x18] sm:$0xff] %vm567, %v791
        %v796 = vld [vmem:[#allocation7] sm:$0xff]
        %v797 = vld [vmem:[#allocation7 + $0x8] sm:$0xff]
        %v798 = vld [vmem:[#allocation7 + $0x10] sm:$0xff]
        %v799 = vld [vmem:[#allocation7 + $0x18] sm:$0xff]
        %800 = vmatprep.subr.mxu0 0.0
        %801 = vmatpush1.msra.mxu0 %v796
        %802 = vmatprep.subr.mxu0 0.0
        %803 = vmatpush1.msra.mxu0 %v797
        %804 = vmatprep.subr.mxu0 0.0
        %805 = vmatpush1.msra.mxu0 %v798
        %806 = vmatprep.subr.mxu0 0.0
        %807 = vmatpush1.msra.mxu0 %v799
        %808 = vmatprep.subr.mxu0 0.0
        %809 = vmatpush1.msra.mxu0 0.0
        %810 = vmatprep.subr.mxu0 0.0
        %811 = vmatpush1.msra.mxu0 0.0
        %812 = vmatprep.subr.mxu0 0.0
        %813 = vmatpush1.msra.mxu0 0.0
        %814 = vmatprep.subr.mxu0 0.0
        %815 = vmatpush1.msra.mxu0 0.0
        %816 = vmatprep.subr.mxu0 0.0
        %817 = vmatpush1.msra.mxu0 0.0
        %818 = vmatprep.subr.mxu0 0.0
        %819 = vmatpush1.msra.mxu0 0.0
        %820 = vmatprep.subr.mxu0 0.0
        %821 = vmatpush1.msra.mxu0 0.0
        %822 = vmatprep.subr.mxu0 0.0
        %823 = vmatpush1.msra.mxu0 0.0
        %824 = vmatprep.subr.mxu0 0.0
        %825 = vmatpush1.msra.mxu0 0.0
        %826 = vmatprep.subr.mxu0 0.0
        %827 = vmatpush1.msra.mxu0 0.0
        %828 = vmatprep.subr.mxu0 0.0
        %829 = vmatpush1.msra.mxu0 0.0
        %830 = vmatprep.subr.mxu0 0.0
        %831 = vmatpush1.msra.mxu0 0.0
        %832 = vmatprep.subr.mxu0 0.0
        %833 = vmatpush1.msra.mxu0 0.0
        %834 = vmatprep.subr.mxu0 0.0
        %835 = vmatpush1.msra.mxu0 0.0
        %836 = vmatprep.subr.mxu0 0.0
        %837 = vmatpush1.msra.mxu0 0.0
        %838 = vmatprep.subr.mxu0 0.0
        %839 = vmatpush1.msra.mxu0 0.0
        %840 = vmatprep.subr.mxu0 0.0
        %841 = vmatpush1.msra.mxu0 0.0
        %842 = vmatprep.subr.mxu0 0.0
        %843 = vmatpush1.msra.mxu0 0.0
        %844 = vmatprep.subr.mxu0 0.0
        %845 = vmatpush1.msra.mxu0 0.0
        %846 = vmatprep.subr.mxu0 0.0
        %847 = vmatpush1.msra.mxu0 0.0
        %848 = vmatprep.subr.mxu0 0.0
        %849 = vmatpush1.msra.mxu0 0.0
        %850 = vmatprep.subr.mxu0 0.0
        %851 = vmatpush1.msra.mxu0 0.0
        %852 = vmatprep.subr.mxu0 0.0
        %853 = vmatpush1.msra.mxu0 0.0
        %854 = vmatprep.subr.mxu0 0.0
        %855 = vmatpush1.msra.mxu0 0.0
        %856 = vmatprep.subr.mxu0 0.0
        %857 = vmatpush1.msra.mxu0 0.0
        %858 = vmatprep.subr.mxu0 0.0
        %859 = vmatpush1.msra.mxu0 0.0
        %860 = vmatprep.subr.mxu0 0.0
        %861 = vmatpush1.msra.mxu0 0.0
        %862 = vmatprep.subr.mxu0 0.0
        %863 = vmatpush1.msra.mxu0 0.0
        %864 = vmatprep.mubr.f32.mxu0 0.0
        %865 = vmatmul.mubr.f32.gmra.mrb[0].mxu0 %v349
        %v866 = vpop.f32.mrb[0].mxu0
        %v867 = vadd.f32 0.0, %v866
        %v868 = vpop.f32.mrb[0].mxu0
        %869 = vdwg.mxu0
        %871 = vrot.lane.b32.xlu0 %v867, 120
        %v872 = vpop.permute.xlu0 %871
        %874 = vrot.lane.b32.xlu0 %v867, 112
        %v875 = vpop.permute.xlu0 %874
        %877 = vrot.lane.b32.xlu0 %v867, 104
        %v878 = vpop.permute.xlu0 %877
        %v880 = vcombine.low %v867, %v875
        %v881 = vcombine.high %v867, %v875
        %v883 = vunpack.c.l.s4 1983009808
        %v884 = vunpack.c.0.s8 %v883
        %v885 = vlaneseq
        %v886 = vshrl.u32 %v885, 7
        %v887 = vsub.s32 %v884, %v886
        %v888 = vrot.slane %v880, %v887
        %v890 = vunpack.c.l.s4 1983009808
        %v891 = vunpack.c.0.s8 %v890
        %v892 = vlaneseq
        %v893 = vshrl.u32 %v892, 7
        %v894 = vsub.s32 %v891, %v893
        %v895 = vrot.slane %v881, %v894
        %v896 = vcombine.low %v872, %v878
        %v897 = vcombine.high %v872, %v878
        %v899 = vunpack.c.l.s4 1983009808
        %v900 = vunpack.c.0.s8 %v899
        %v901 = vlaneseq
        %v902 = vshrl.u32 %v901, 7
        %v903 = vsub.s32 %v900, %v902
        %v904 = vrot.slane %v896, %v903
        %v906 = vunpack.c.l.s4 1983009808
        %v907 = vunpack.c.0.s8 %v906
        %v908 = vlaneseq
        %v909 = vshrl.u32 %v908, 7
        %v910 = vsub.s32 %v907, %v909
        %v911 = vrot.slane %v897, %v910
        %v912 = vcombine.low %v888, %v904
        %v913 = vcombine.high %v888, %v904
        %v915 = vunpack.c.l.s4 1934713408
        %v916 = vunpack.c.0.s8 %v915
        %v917 = vlaneseq
        %v918 = vshrl.u32 %v917, 7
        %v919 = vsub.s32 %v916, %v918
        %v920 = vrot.slane %v912, %v919
        %v922 = vunpack.c.l.s4 1934713408
        %v923 = vunpack.c.0.s8 %v922
        %v924 = vlaneseq
        %v925 = vshrl.u32 %v924, 7
        %v926 = vsub.s32 %v923, %v925
        %v927 = vrot.slane %v913, %v926
        %v928 = vcombine.low %v895, %v911
        %v929 = vcombine.high %v895, %v911
        %v931 = vunpack.c.l.s4 1934713408
        %v932 = vunpack.c.0.s8 %v931
        %v933 = vlaneseq
        %v934 = vshrl.u32 %v933, 7
        %v935 = vsub.s32 %v932, %v934
        %v936 = vrot.slane %v928, %v935
        %v938 = vunpack.c.l.s4 1934713408
        %v939 = vunpack.c.0.s8 %v938
        %v940 = vlaneseq
        %v941 = vshrl.u32 %v940, 7
        %v942 = vsub.s32 %v939, %v941
        %v943 = vrot.slane %v929, %v942
        %v944 = vcombine.high %v920, 0.0
        %v945 = vcombine.high %v927, 0.0
        %v946 = vcombine.high %v936, 0.0
        %v947 = vcombine.high %v943, 0.0
        %v948 = vcombine.low %v920, %v927
        %v950 = vunpack.c.l.s4 1983009808
        %v951 = vunpack.c.0.s8 %v950
        %v952 = vlaneseq
        %v953 = vshrl.u32 %v952, 7
        %v954 = vsub.s32 %v951, %v953
        %v955 = vrot.slane %v948, %v954
        %v956 = vcombine.low %v944, %v945
        %v958 = vunpack.c.l.s4 1983009808
        %v959 = vunpack.c.0.s8 %v958
        %v960 = vlaneseq
        %v961 = vshrl.u32 %v960, 7
        %v962 = vsub.s32 %v959, %v961
        %v963 = vrot.slane %v956, %v962
        %v964 = vcombine.low %v936, %v943
        %v966 = vunpack.c.l.s4 1983009808
        %v967 = vunpack.c.0.s8 %v966
        %v968 = vlaneseq
        %v969 = vshrl.u32 %v968, 7
        %v970 = vsub.s32 %v967, %v969
        %v971 = vrot.slane %v964, %v970
        %v972 = vcombine.low %v946, %v947
        %v974 = vunpack.c.l.s4 1983009808
        %v975 = vunpack.c.0.s8 %v974
        %v976 = vlaneseq
        %v977 = vshrl.u32 %v976, 7
        %v978 = vsub.s32 %v975, %v977
        %v979 = vrot.slane %v972, %v978
        %v980 = vcombine.low %v955, %v963
        %v981 = vcombine.high %v955, %v963
        %v983 = vunpack.c.l.s4 1934713408
        %v984 = vunpack.c.0.s8 %v983
        %v985 = vlaneseq
        %v986 = vshrl.u32 %v985, 7
        %v987 = vsub.s32 %v984, %v986
        %v988 = vrot.slane %v980, %v987
        %v990 = vunpack.c.l.s4 1934713408
        %v991 = vunpack.c.0.s8 %v990
        %v992 = vlaneseq
        %v993 = vshrl.u32 %v992, 7
        %v994 = vsub.s32 %v991, %v993
        %v995 = vrot.slane %v981, %v994
        %v996 = vcombine.low %v971, %v979
        %v997 = vcombine.high %v971, %v979
        %v999 = vunpack.c.l.s4 1934713408
        %v1000 = vunpack.c.0.s8 %v999
        %v1001 = vlaneseq
        %v1002 = vshrl.u32 %v1001, 7
        %v1003 = vsub.s32 %v1000, %v1002
        %v1004 = vrot.slane %v996, %v1003
        %v1006 = vunpack.c.l.s4 1934713408
        %v1007 = vunpack.c.0.s8 %v1006
        %v1008 = vlaneseq
        %v1009 = vshrl.u32 %v1008, 7
        %v1010 = vsub.s32 %v1007, %v1009
        %v1011 = vrot.slane %v997, %v1010
        %v1012 = vcombine.low %v988, %v1004
        %v1013 = vcombine.high %v988, %v1004
        %v1014 = vcombine.low %v995, %v1011
        %v1015 = vcombine.high %v995, %v1011
        %1016 = vst.msk [vmem:[%s341] sm:$0xff] %vm567, %v1012
        %1017 = vst.msk [vmem:[%s341 + $0x8] sm:$0xff] %vm567, %v1013
        %1018 = vst.msk [vmem:[%s341 + $0x10] sm:$0xff] %vm567, %v1014
        %1019 = vst.msk [vmem:[%s341 + $0x18] sm:$0xff] %vm567, %v1015
        %s1020 = sand.u32 %s136, 1
        %s1021 = sand.u32 %s136, 1
        %s1022 = smul.addr %s1021, 32
        %s1023 = scalar_lea.vmem [#allocation9], %s1022
        %s1024 = sand.u32 %s164, 1
        %s1025 = sand.u32 %s164, 1
        %s1026 = smul.addr %s1025, 32
        %s1027 = scalar_lea.vmem [#allocation10], %s1026
        %s1028 = sand.u32 %s192, 1
        %s1029 = sand.u32 %s192, 1
        %s1030 = smul.addr %s1029, 32
        %s1031 = scalar_lea.vmem [#allocation11], %s1030
        // Predicated region
        $region53: #{tpu_custom_call.1} parent=35 // pred_check
          %p1032 = pneg %p146
        $region54: #{tpu_custom_call.1} parent=35 // pred_check_branch
          %1034 = sbr.rel (%p1032) target = $region56
        $region55: #{tpu_custom_call.1} parent=35 // pred_region
          %s1035 = smul.addr %s27, 8
          %s1036 = sadd.s32 %s28, %s1035
          %s1037 = smul.addr %s1036, 8
          %s1038 = scalar_lea.vmem %s4, %s1037
          // Predicated region
          $region57: #{tpu_custom_call.1} parent=55 // pred_check
            _
          $region58: #{tpu_custom_call.1} parent=55 // pred_check_branch
            %1040 = sbr.rel (0) target = $region60
          $region59: #{tpu_custom_call.1} parent=55 // pred_region
            // Predicated region
            $region61: #{tpu_custom_call.1} parent=59 // pred_check
              _
            $region62: #{tpu_custom_call.1} parent=59 // pred_check_branch
              %1042 = sbr.rel (0) target = $region64
            $region63: #{tpu_custom_call.1} parent=59 // pred_region
              // Predicated region
              $region76: #{tpu_custom_call.1} parent=63 // pred_check
                _
              $region77: #{tpu_custom_call.1} parent=63 // pred_check_branch
                %1063 = sbr.rel (0) target = $region79
              $region78: #{tpu_custom_call.1} parent=63 // pred_region
                loop: start=0, step=1, limit=1
                $region80: #{tpu_custom_call.1} parent=78 // loop_pre_header
                  _
                $region81: #{tpu_custom_call.1} parent=78 // loop_header
                  %s1065 = sphi 0, %s1069
                  %p1066 = scmp.ge.s32.totalorder %s1065, 1
                  %s1070 = sphi %s1023, %s1023
                  %s1071 = sphi %s1038, %s1038
                $region82: #{tpu_custom_call.1} parent=78 // loop_header_branch
                  %1068 = sbr.rel (%p1066) target = $region86
                $region83: #{tpu_custom_call.1} parent=78 // loop_body
                  %v1072 = vld [vmem:[%s1070] sm:$0xff]
                  %1073 = vst [vmem:[%s1071] sm:$0xff] %v1072
                  %v1074 = vld [vmem:[%s1070 + $0x8] sm:$0xff]
                  %1075 = vst [vmem:[%s1071 + $0x10] sm:$0xff] %v1074
                  %v1076 = vld [vmem:[%s1070 + $0x10] sm:$0xff]
                  %1077 = vst [vmem:[%s1071 + $0x20] sm:$0xff] %v1076
                  %v1078 = vld [vmem:[%s1070 + $0x18] sm:$0xff]
                  %1079 = vst [vmem:[%s1071 + $0x30] sm:$0xff] %v1078
                $region84: #{tpu_custom_call.1} parent=78 // loop_footer
                  %s1069 = sadd.s32 1, %s1065
                $region85: #{tpu_custom_call.1} parent=78 // loop_footer_branch
                  %1064 = sbr.rel target = $region81
                $region86: #{tpu_custom_call.1} parent=78 // loop_exit
                  _
              $region79: #{tpu_custom_call.1} parent=63 // pred_fallthru
                _
              // Predicated region
              $region87: #{tpu_custom_call.1} parent=63 // pred_check
                _
              $region88: #{tpu_custom_call.1} parent=63 // pred_check_branch
                %1081 = sbr.rel target = $region90
              $region89: #{tpu_custom_call.1} parent=63 // pred_region
                _
              $region90: #{tpu_custom_call.1} parent=63 // pred_fallthru
                _
            $region64: #{tpu_custom_call.1} parent=59 // pred_fallthru
              _
            // Predicated region
            $region65: #{tpu_custom_call.1} parent=59 // pred_check
              _
            $region66: #{tpu_custom_call.1} parent=59 // pred_check_branch
              %1044 = sbr.rel target = $region68
            $region67: #{tpu_custom_call.1} parent=59 // pred_region
              loop: start=0, step=1, limit=1
              $region69: #{tpu_custom_call.1} parent=67 // loop_pre_header
                _
              $region70: #{tpu_custom_call.1} parent=67 // loop_header
                %s1047 = sphi 0, %s1051
                %p1048 = scmp.ge.s32.totalorder %s1047, 1
                %s1052 = sphi %s1023, %s1023
                %s1053 = sphi %s1038, %s1038
              $region71: #{tpu_custom_call.1} parent=67 // loop_header_branch
                %1050 = sbr.rel (%p1048) target = $region75
              $region72: #{tpu_custom_call.1} parent=67 // loop_body
                %v1054 = vld [vmem:[%s1052] sm:$0xff]
                %1055 = vst [vmem:[%s1053] sm:$0xff] %v1054
                %v1056 = vld [vmem:[%s1052 + $0x8] sm:$0xff]
                %1057 = vst [vmem:[%s1053 + $0x10] sm:$0xff] %v1056
                %v1058 = vld [vmem:[%s1052 + $0x10] sm:$0xff]
                %1059 = vst [vmem:[%s1053 + $0x20] sm:$0xff] %v1058
                %v1060 = vld [vmem:[%s1052 + $0x18] sm:$0xff]
                %1061 = vst [vmem:[%s1053 + $0x30] sm:$0xff] %v1060
              $region73: #{tpu_custom_call.1} parent=67 // loop_footer
                %s1051 = sadd.s32 1, %s1047
              $region74: #{tpu_custom_call.1} parent=67 // loop_footer_branch
                %1046 = sbr.rel target = $region70
              $region75: #{tpu_custom_call.1} parent=67 // loop_exit
                _
            $region68: #{tpu_custom_call.1} parent=59 // pred_fallthru
              _
          $region60: #{tpu_custom_call.1} parent=55 // pred_fallthru
            _
          %1082 = vnop
        $region56: #{tpu_custom_call.1} parent=35 // pred_fallthru
          _
        // Predicated region
        $region91: #{tpu_custom_call.1} parent=35 // pred_check
          %p1083 = pneg %p174
        $region92: #{tpu_custom_call.1} parent=35 // pred_check_branch
          %1085 = sbr.rel (%p1083) target = $region94
        $region93: #{tpu_custom_call.1} parent=35 // pred_region
          %s1086 = smul.addr %s27, 8
          %s1087 = sadd.s32 %s28, %s1086
          %s1088 = smul.addr %s1087, 8
          %s1089 = scalar_lea.vmem %s5, %s1088
          // Predicated region
          $region95: #{tpu_custom_call.1} parent=93 // pred_check
            _
          $region96: #{tpu_custom_call.1} parent=93 // pred_check_branch
            %1091 = sbr.rel (0) target = $region98
          $region97: #{tpu_custom_call.1} parent=93 // pred_region
            // Predicated region
            $region99: #{tpu_custom_call.1} parent=97 // pred_check
              _
            $region100: #{tpu_custom_call.1} parent=97 // pred_check_branch
              %1093 = sbr.rel (0) target = $region102
            $region101: #{tpu_custom_call.1} parent=97 // pred_region
              // Predicated region
              $region114: #{tpu_custom_call.1} parent=101 // pred_check
                _
              $region115: #{tpu_custom_call.1} parent=101 // pred_check_branch
                %1114 = sbr.rel (0) target = $region117
              $region116: #{tpu_custom_call.1} parent=101 // pred_region
                loop: start=0, step=1, limit=1
                $region118: #{tpu_custom_call.1} parent=116 // loop_pre_header
                  _
                $region119: #{tpu_custom_call.1} parent=116 // loop_header
                  %s1116 = sphi 0, %s1120
                  %p1117 = scmp.ge.s32.totalorder %s1116, 1
                  %s1121 = sphi %s1027, %s1027
                  %s1122 = sphi %s1089, %s1089
                $region120: #{tpu_custom_call.1} parent=116 // loop_header_branch
                  %1119 = sbr.rel (%p1117) target = $region124
                $region121: #{tpu_custom_call.1} parent=116 // loop_body
                  %v1123 = vld [vmem:[%s1121] sm:$0xff]
                  %1124 = vst [vmem:[%s1122] sm:$0xff] %v1123
                  %v1125 = vld [vmem:[%s1121 + $0x8] sm:$0xff]
                  %1126 = vst [vmem:[%s1122 + $0x10] sm:$0xff] %v1125
                  %v1127 = vld [vmem:[%s1121 + $0x10] sm:$0xff]
                  %1128 = vst [vmem:[%s1122 + $0x20] sm:$0xff] %v1127
                  %v1129 = vld [vmem:[%s1121 + $0x18] sm:$0xff]
                  %1130 = vst [vmem:[%s1122 + $0x30] sm:$0xff] %v1129
                $region122: #{tpu_custom_call.1} parent=116 // loop_footer
                  %s1120 = sadd.s32 1, %s1116
                $region123: #{tpu_custom_call.1} parent=116 // loop_footer_branch
                  %1115 = sbr.rel target = $region119
                $region124: #{tpu_custom_call.1} parent=116 // loop_exit
                  _
              $region117: #{tpu_custom_call.1} parent=101 // pred_fallthru
                _
              // Predicated region
              $region125: #{tpu_custom_call.1} parent=101 // pred_check
                _
              $region126: #{tpu_custom_call.1} parent=101 // pred_check_branch
                %1132 = sbr.rel target = $region128
              $region127: #{tpu_custom_call.1} parent=101 // pred_region
                _
              $region128: #{tpu_custom_call.1} parent=101 // pred_fallthru
                _
            $region102: #{tpu_custom_call.1} parent=97 // pred_fallthru
              _
            // Predicated region
            $region103: #{tpu_custom_call.1} parent=97 // pred_check
              _
            $region104: #{tpu_custom_call.1} parent=97 // pred_check_branch
              %1095 = sbr.rel target = $region106
            $region105: #{tpu_custom_call.1} parent=97 // pred_region
              loop: start=0, step=1, limit=1
              $region107: #{tpu_custom_call.1} parent=105 // loop_pre_header
                _
              $region108: #{tpu_custom_call.1} parent=105 // loop_header
                %s1098 = sphi 0, %s1102
                %p1099 = scmp.ge.s32.totalorder %s1098, 1
                %s1103 = sphi %s1027, %s1027
                %s1104 = sphi %s1089, %s1089
              $region109: #{tpu_custom_call.1} parent=105 // loop_header_branch
                %1101 = sbr.rel (%p1099) target = $region113
              $region110: #{tpu_custom_call.1} parent=105 // loop_body
                %v1105 = vld [vmem:[%s1103] sm:$0xff]
                %1106 = vst [vmem:[%s1104] sm:$0xff] %v1105
                %v1107 = vld [vmem:[%s1103 + $0x8] sm:$0xff]
                %1108 = vst [vmem:[%s1104 + $0x10] sm:$0xff] %v1107
                %v1109 = vld [vmem:[%s1103 + $0x10] sm:$0xff]
                %1110 = vst [vmem:[%s1104 + $0x20] sm:$0xff] %v1109
                %v1111 = vld [vmem:[%s1103 + $0x18] sm:$0xff]
                %1112 = vst [vmem:[%s1104 + $0x30] sm:$0xff] %v1111
              $region111: #{tpu_custom_call.1} parent=105 // loop_footer
                %s1102 = sadd.s32 1, %s1098
              $region112: #{tpu_custom_call.1} parent=105 // loop_footer_branch
                %1097 = sbr.rel target = $region108
              $region113: #{tpu_custom_call.1} parent=105 // loop_exit
                _
            $region106: #{tpu_custom_call.1} parent=97 // pred_fallthru
              _
          $region98: #{tpu_custom_call.1} parent=93 // pred_fallthru
            _
          %1133 = vnop
        $region94: #{tpu_custom_call.1} parent=35 // pred_fallthru
          _
        // Predicated region
        $region129: #{tpu_custom_call.1} parent=35 // pred_check
          %p1134 = pneg %p202
        $region130: #{tpu_custom_call.1} parent=35 // pred_check_branch
          %1136 = sbr.rel (%p1134) target = $region132
        $region131: #{tpu_custom_call.1} parent=35 // pred_region
          %s1137 = smul.addr %s27, 8
          %s1138 = sadd.s32 %s28, %s1137
          %s1139 = smul.addr %s1138, 8
          %s1140 = scalar_lea.vmem %s6, %s1139
          // Predicated region
          $region133: #{tpu_custom_call.1} parent=131 // pred_check
            _
          $region134: #{tpu_custom_call.1} parent=131 // pred_check_branch
            %1142 = sbr.rel (0) target = $region136
          $region135: #{tpu_custom_call.1} parent=131 // pred_region
            // Predicated region
            $region137: #{tpu_custom_call.1} parent=135 // pred_check
              _
            $region138: #{tpu_custom_call.1} parent=135 // pred_check_branch
              %1144 = sbr.rel (0) target = $region140
            $region139: #{tpu_custom_call.1} parent=135 // pred_region
              // Predicated region
              $region152: #{tpu_custom_call.1} parent=139 // pred_check
                _
              $region153: #{tpu_custom_call.1} parent=139 // pred_check_branch
                %1165 = sbr.rel (0) target = $region155
              $region154: #{tpu_custom_call.1} parent=139 // pred_region
                loop: start=0, step=1, limit=1
                $region156: #{tpu_custom_call.1} parent=154 // loop_pre_header
                  _
                $region157: #{tpu_custom_call.1} parent=154 // loop_header
                  %s1167 = sphi 0, %s1171
                  %p1168 = scmp.ge.s32.totalorder %s1167, 1
                  %s1172 = sphi %s1031, %s1031
                  %s1173 = sphi %s1140, %s1140
                $region158: #{tpu_custom_call.1} parent=154 // loop_header_branch
                  %1170 = sbr.rel (%p1168) target = $region162
                $region159: #{tpu_custom_call.1} parent=154 // loop_body
                  %v1174 = vld [vmem:[%s1172] sm:$0xff]
                  %1175 = vst [vmem:[%s1173] sm:$0xff] %v1174
                  %v1176 = vld [vmem:[%s1172 + $0x8] sm:$0xff]
                  %1177 = vst [vmem:[%s1173 + $0x10] sm:$0xff] %v1176
                  %v1178 = vld [vmem:[%s1172 + $0x10] sm:$0xff]
                  %1179 = vst [vmem:[%s1173 + $0x20] sm:$0xff] %v1178
                  %v1180 = vld [vmem:[%s1172 + $0x18] sm:$0xff]
                  %1181 = vst [vmem:[%s1173 + $0x30] sm:$0xff] %v1180
                $region160: #{tpu_custom_call.1} parent=154 // loop_footer
                  %s1171 = sadd.s32 1, %s1167
                $region161: #{tpu_custom_call.1} parent=154 // loop_footer_branch
                  %1166 = sbr.rel target = $region157
                $region162: #{tpu_custom_call.1} parent=154 // loop_exit
                  _
              $region155: #{tpu_custom_call.1} parent=139 // pred_fallthru
                _
              // Predicated region
              $region163: #{tpu_custom_call.1} parent=139 // pred_check
                _
              $region164: #{tpu_custom_call.1} parent=139 // pred_check_branch
                %1183 = sbr.rel target = $region166
              $region165: #{tpu_custom_call.1} parent=139 // pred_region
                _
              $region166: #{tpu_custom_call.1} parent=139 // pred_fallthru
                _
            $region140: #{tpu_custom_call.1} parent=135 // pred_fallthru
              _
            // Predicated region
            $region141: #{tpu_custom_call.1} parent=135 // pred_check
              _
            $region142: #{tpu_custom_call.1} parent=135 // pred_check_branch
              %1146 = sbr.rel target = $region144
            $region143: #{tpu_custom_call.1} parent=135 // pred_region
              loop: start=0, step=1, limit=1
              $region145: #{tpu_custom_call.1} parent=143 // loop_pre_header
                _
              $region146: #{tpu_custom_call.1} parent=143 // loop_header
                %s1149 = sphi 0, %s1153
                %p1150 = scmp.ge.s32.totalorder %s1149, 1
                %s1154 = sphi %s1031, %s1031
                %s1155 = sphi %s1140, %s1140
              $region147: #{tpu_custom_call.1} parent=143 // loop_header_branch
                %1152 = sbr.rel (%p1150) target = $region151
              $region148: #{tpu_custom_call.1} parent=143 // loop_body
                %v1156 = vld [vmem:[%s1154] sm:$0xff]
                %1157 = vst [vmem:[%s1155] sm:$0xff] %v1156
                %v1158 = vld [vmem:[%s1154 + $0x8] sm:$0xff]
                %1159 = vst [vmem:[%s1155 + $0x10] sm:$0xff] %v1158
                %v1160 = vld [vmem:[%s1154 + $0x10] sm:$0xff]
                %1161 = vst [vmem:[%s1155 + $0x20] sm:$0xff] %v1160
                %v1162 = vld [vmem:[%s1154 + $0x18] sm:$0xff]
                %1163 = vst [vmem:[%s1155 + $0x30] sm:$0xff] %v1162
              $region149: #{tpu_custom_call.1} parent=143 // loop_footer
                %s1153 = sadd.s32 1, %s1149
              $region150: #{tpu_custom_call.1} parent=143 // loop_footer_branch
                %1148 = sbr.rel target = $region146
              $region151: #{tpu_custom_call.1} parent=143 // loop_exit
                _
            $region144: #{tpu_custom_call.1} parent=135 // pred_fallthru
              _
          $region136: #{tpu_custom_call.1} parent=131 // pred_fallthru
            _
          %1184 = vnop
        $region132: #{tpu_custom_call.1} parent=35 // pred_fallthru
          _
      $region36: #{tpu_custom_call.1} parent=5 // pred_fallthru
        _
      %p1185 = scmp.le.s32.totalorder 2, %s18
      // Predicated region
      $region167: #{tpu_custom_call.1} parent=5 // pred_check
        %p1186 = pneg %p1185
      $region168: #{tpu_custom_call.1} parent=5 // pred_check_branch
        %1188 = sbr.rel (%p1186) target = $region170
      $region169: #{tpu_custom_call.1} parent=5 // pred_region
        %s1189 = ssub.s32 %s18, 2
        // Predicated region
        $region171: #{tpu_custom_call.1} parent=169 // pred_check
          %p1190 = pneg %p152
        $region172: #{tpu_custom_call.1} parent=169 // pred_check_branch
          %1192 = sbr.rel (%p1190) target = $region174
        $region173: #{tpu_custom_call.1} parent=169 // pred_region
          %s1193 = sand.u32 %s137, 1
          %s1194 = sand.u32 %s137, 1
          %s1195 = smul.addr %s1194, 32
          %s1196 = scalar_lea.vmem [#allocation9], %s1195
        $region174: #{tpu_custom_call.1} parent=169 // pred_fallthru
          _
        // Predicated region
        $region175: #{tpu_custom_call.1} parent=169 // pred_check
          %p1197 = pneg %p180
        $region176: #{tpu_custom_call.1} parent=169 // pred_check_branch
          %1199 = sbr.rel (%p1197) target = $region178
        $region177: #{tpu_custom_call.1} parent=169 // pred_region
          %s1200 = sand.u32 %s165, 1
          %s1201 = sand.u32 %s165, 1
          %s1202 = smul.addr %s1201, 32
          %s1203 = scalar_lea.vmem [#allocation10], %s1202
        $region178: #{tpu_custom_call.1} parent=169 // pred_fallthru
          _
        // Predicated region
        $region179: #{tpu_custom_call.1} parent=169 // pred_check
          %p1204 = pneg %p208
        $region180: #{tpu_custom_call.1} parent=169 // pred_check_branch
          %1206 = sbr.rel (%p1204) target = $region182
        $region181: #{tpu_custom_call.1} parent=169 // pred_region
          %s1207 = sand.u32 %s193, 1
          %s1208 = sand.u32 %s193, 1
          %s1209 = smul.addr %s1208, 32
          %s1210 = scalar_lea.vmem [#allocation11], %s1209
        $region182: #{tpu_custom_call.1} parent=169 // pred_fallthru
          _
      $region170: #{tpu_custom_call.1} parent=5 // pred_fallthru
        _
    $region6: #{tpu_custom_call.1} parent=1 // loop_footer
      %s22 = sadd.s32 1, %s18
    $region7: #{tpu_custom_call.1} parent=1 // loop_footer_branch
      %17 = sbr.rel target = $region3
    $region8: #{tpu_custom_call.1} parent=1 // loop_exit
      _
    %1211 = vsyncpa [#allocation3], 1
    %s1212 = scalar_lea.sflag [#allocation3], 1
    %1213 = vsyncpa %s1212, 1
    %1214 = vsyncpa [#allocation5], 1
    %1215 = vsyncpa [#allocation8], 1

</llo_original>
